<compile_context>
chip_gen: v6e
topology: v6e:2x2x1
jax: 0.10.0
libtpu: 0.0.40
codegen_flags: <defaults>
</compile_context>

<pallas_src>
import functools

import jax
import jax.numpy as jnp
from jax import lax
from jax.experimental import pallas as pl
from jax.experimental.pallas import tpu as pltpu

EMBEDDING_DIM = 30  # hard-coded in the PyTorch module (__init__ overrides the arg)


def _round_up(x, m):
    return ((x + m - 1) // m) * m


def _vq_kernel(x_ref, e_ref, q_ref, d_ref, enc_ref, idx_ref, psum_ref,
               *, n_valid, m_valid, mask_rows):
    """One M-tile of the VQ hot path, entirely in VMEM.

    x_ref   : (tm, D)        input vectors for this tile
    e_ref   : (N_pad, D)     codebook, zero-padded rows beyond n_valid (resident)
    q_ref   : (tm, D)        quantized output (= one_hot @ codebook)
    d_ref   : (tm, N_pad)    squared-L2 distances (pad columns are junk, stripped)
    enc_ref : (tm, N_pad)    one-hot encodings (float32)
    idx_ref : (tm, 1)        argmin indices (int32)
    psum_ref: (1, 8, N_pad)  per-tile column sum of the one-hot encodings
                             (replicated over the 8 sublanes for a dense store)
    """
    x = x_ref[...]                                           # (tm, D) f32
    e = e_ref[...]                                           # (N_pad, D) f32

    # ||x||^2 + ||e||^2 - 2 x.e^T  -- no explicit transpose of the codebook:
    # dot_general contracts the D axis of both operands directly on the MXU.
    x_sq = jnp.sum(x * x, axis=1, keepdims=True)             # (tm, 1)
    e_sq = jnp.sum(e * e, axis=1)[None, :]                   # (1, N_pad)
    cross = lax.dot_general(
        x, e, dimension_numbers=(((1,), (1,)), ((), ())),
        preferred_element_type=jnp.float32)                  # (tm, N_pad)
    d = x_sq + e_sq - 2.0 * cross
    d_ref[...] = d

    # argmin along the codebook axis, first-minimal-index like torch.argmin.
    n_pad = d.shape[1]
    col = lax.broadcasted_iota(jnp.int32, d.shape, 1)        # (tm, N_pad)
    if n_valid != n_pad:
        # Exclude zero-padded codebook rows from the argmin.
        d_for_min = jnp.where(col < n_valid, d, jnp.inf)
    else:
        d_for_min = d
    min_d = jnp.min(d_for_min, axis=1, keepdims=True)        # (tm, 1)
    idx = jnp.min(jnp.where(d_for_min == min_d, col, n_pad),
                  axis=1, keepdims=True)                     # (tm, 1)
    idx_ref[...] = idx.astype(jnp.int32)

    # one-hot encodings (torch: zeros().scatter_(1, idx, 1)); pad columns are 0.
    enc = (col == idx).astype(jnp.float32)                   # (tm, N_pad)
    enc_ref[...] = enc

    # quantized = encodings @ codebook (MXU); padded codebook rows multiply 0.
    q_ref[...] = jnp.dot(enc, e, preferred_element_type=jnp.float32)

    # Per-tile column sum of the one-hot encodings (for avg_probs / perplexity),
    # with M-padding rows masked out so they do not count as "used" codes.
    if mask_rows:
        tm = enc.shape[0]
        row = (lax.broadcasted_iota(jnp.int32, (tm, 1), 0)
               + pl.program_id(0) * tm)                      # (tm, 1) global row id
        enc_for_sum = jnp.where(row < m_valid, enc, 0.0)
    else:
        enc_for_sum = enc
    colsum = jnp.sum(enc_for_sum, axis=0, keepdims=True)     # (1, N_pad)
    psum_ref[...] = jnp.broadcast_to(colsum[None, :, :], psum_ref.shape)


def _vq_pallas(flat_input, emb_weight, *, tile_m=512):
    """Tiled pallas_call over M; returns (quantized, distances, encodings, idx, avg_probs)."""
    M, D = flat_input.shape
    N, _ = emb_weight.shape

    # Lane-dense output last dim: pad the codebook axis to a multiple of 128.
    N_pad = _round_up(N, 128)
    # M tile: multiple of 8 sublanes, capped at tile_m; pad M up to a multiple.
    tm = min(tile_m, _round_up(M, 8))
    M_pad = _round_up(M, tm)

    x_p = flat_input
    if M_pad != M:
        x_p = jnp.pad(flat_input, ((0, M_pad - M), (0, 0)))
    e_p = emb_weight
    if N_pad != N:
        e_p = jnp.pad(emb_weight, ((0, N_pad - N), (0, 0)))  # zero rows, masked in-kernel

    grid_m = M_pad // tm
    kernel = functools.partial(
        _vq_kernel, n_valid=N, m_valid=M, mask_rows=(M_pad != M))

    cost = pl.CostEstimate(
        flops=4 * M_pad * N_pad * D,                # cross matmul + one-hot matmul
        transcendentals=0,
        bytes_accessed=4 * (2 * M_pad * D + N_pad * D + 2 * M_pad * N_pad
                            + M_pad + grid_m * 8 * N_pad),
    )

    q_p, d_p, enc_p, idx_p, psum_p = pl.pallas_call(
        kernel,
        grid=(grid_m,),
        in_specs=[
            pl.BlockSpec((tm, D), lambda i: (i, 0)),        # x tile, pipelined
            pl.BlockSpec((N_pad, D), lambda i: (0, 0)),     # codebook, resident
        ],
        out_specs=(
            pl.BlockSpec((tm, D), lambda i: (i, 0)),        # quantized
            pl.BlockSpec((tm, N_pad), lambda i: (i, 0)),    # distances (lane-dense)
            pl.BlockSpec((tm, N_pad), lambda i: (i, 0)),    # one-hot (lane-dense)
            pl.BlockSpec((tm, 1), lambda i: (i, 0)),        # indices
            pl.BlockSpec((1, 8, N_pad), lambda i: (i, 0, 0)),  # partial column sums
        ),
        out_shape=(
            jax.ShapeDtypeStruct((M_pad, D), jnp.float32),
            jax.ShapeDtypeStruct((M_pad, N_pad), jnp.float32),
            jax.ShapeDtypeStruct((M_pad, N_pad), jnp.float32),
            jax.ShapeDtypeStruct((M_pad, 1), jnp.int32),
            jax.ShapeDtypeStruct((grid_m, 8, N_pad), jnp.float32),
        ),
        compiler_params=pltpu.CompilerParams(
            dimension_semantics=("parallel",),
            vmem_limit_bytes=32 * 1024 * 1024,
        ),
        cost_estimate=cost,
    )(x_p, e_p)

    # avg_probs from the per-tile partial sums: a tiny (grid_m, N) reduction
    # instead of re-reading the full (M, N) encodings from HBM.
    counts = jnp.sum(psum_p[:, 0, :N], axis=0)               # (N,)
    avg_probs = counts / jnp.float32(M)

    # Strip M / N padding.
    return q_p[:M], d_p[:M, :N], enc_p[:M, :N], idx_p[:M], avg_probs


@functools.partial(jax.jit, static_argnames=("commitment_cost", "sample_index"))
def vector_quantizer_forward(x, emb_weight, commitment_cost=0.25, sample_index=None):
    """Mirrors VectorQuantizer.forward in training mode (module default).

    x          : (embedding_dim=30, C, T)  -- the module permutes to (T, C, 30)
                 and flattens to (M, 30) before quantizing.
    emb_weight : (num_embeddings, 30)
    """
    # inputs.permute(2, 1, 0)
    inputs = jnp.transpose(x, (2, 1, 0)).astype(jnp.float32)   # (T, C, 30)
    input_shape = inputs.shape
    time, C, batch_size = input_shape    # mirrors torch's (questionable) naming
    flat_input = inputs.reshape(-1, EMBEDDING_DIM)              # (M, 30)

    quantized_flat, distances, encodings, encoding_indices, avg_probs = _vq_pallas(
        flat_input, emb_weight.astype(jnp.float32))

    quantized = quantized_flat.reshape(input_shape)             # (T, C, 30)

    # TODO(synk): the torch training path draws sample_index = np.random.randint(C)+1
    # on the host; we keep it deterministic via the module's `designate` / `eval`
    # escape hatch (sample_index=None == eval path, full area).
    area = C
    if sample_index is None:
        sample_index = area

    e_latent_loss = jnp.mean(
        (lax.stop_gradient(quantized)[:, :sample_index] - inputs[:, :sample_index]) ** 2)
    q_latent_loss = jnp.mean((quantized - lax.stop_gradient(inputs)) ** 2)
    commitment_loss = commitment_cost * e_latent_loss
    # NOTE: matches the reference exactly: the commitment term is multiplied by 0.0.
    vq_loss = q_latent_loss + 0.0 * commitment_loss

    # straight-through estimator
    quantized_st = inputs + lax.stop_gradient(quantized - inputs)

    perplexity = jnp.exp(-jnp.sum(avg_probs * jnp.log(avg_probs + 1e-10)))

    losses = {
        "e_latent_loss": e_latent_loss,
        "q_latent_loss": q_latent_loss,
        "commitment_loss": commitment_loss,
        "vq_loss": vq_loss,
    }

    # TODO(synk): eval-only pairwise torch.dist loops (encoding_distances,
    # embedding_distances, frames_vs_embedding_distances) and the
    # record_codebook_stats concatenated_quantized path only run when the
    # module is NOT training; a fresh nn.Module is training, so they are None.
    encoding_distances = None
    embedding_distances = None
    frames_vs_embedding_distances = None
    concatenated_quantized = None

    return (vq_loss,
            jnp.transpose(quantized_st, (2, 1, 0)),              # back to (30, C, T)
            perplexity,
            encodings.reshape(batch_size, C, -1),                # mirrors torch .view
            distances.reshape(batch_size, C, -1),
            encoding_indices,
            losses,
            encoding_distances,
            embedding_distances,
            frames_vs_embedding_distances,
            concatenated_quantized)


if __name__ == "__main__":
    num_embeddings = 64
    C, T = 4, 15          # T chosen so the module's .view(batch_size=30, C, -1) is valid
    commitment_cost = 0.25

    key = jax.random.PRNGKey(0)
    kx, kw = jax.random.split(key)
    x = jax.random.normal(kx, (EMBEDDING_DIM, C, T), dtype=jnp.float32)
    # nn.Embedding weight, .uniform_(-1, 1), deterministic init
    emb_weight = jax.random.uniform(
        kw, (num_embeddings, EMBEDDING_DIM), minval=-1.0, maxval=1.0, dtype=jnp.float32)

    out = vector_quantizer_forward(x, emb_weight, commitment_cost=commitment_cost)
    jax.block_until_ready(out[0])   # vq_loss
    jax.block_until_ready(out[1])   # quantized (straight-through)
    jax.block_until_ready(out[2])   # perplexity
    jax.block_until_ready(out[3])   # encodings
    jax.block_until_ready(out[4])   # distances
    jax.block_until_ready(out[5])   # encoding indices

    # ---- correctness check against a pure-JAX reference ----
    flat = jnp.transpose(x, (2, 1, 0)).reshape(-1, EMBEDDING_DIM)
    d_ref = (jnp.sum(flat ** 2, axis=1, keepdims=True)
             + jnp.sum(emb_weight ** 2, axis=1)
             - 2.0 * jnp.dot(flat, emb_weight.T, precision=lax.Precision.HIGHEST))

    d_out = out[4].reshape(-1, num_embeddings)
    idx_out = out[5][:, 0]
    q_out = jnp.transpose(out[1], (2, 1, 0)).reshape(-1, EMBEDDING_DIM)
    enc_out = out[3].reshape(-1, num_embeddings)

    # distances match the analytic formula
    assert bool(jnp.allclose(d_out, d_ref, atol=1e-2, rtol=1e-4)), "distance mismatch"
    # quantized rows are exactly the selected codebook entries (up to ST rounding)
    assert bool(jnp.allclose(q_out, emb_weight[idx_out], atol=1e-4)), "quantized mismatch"
    # selected codes are (within fp tolerance) nearest codes
    chosen = jnp.take_along_axis(d_ref, idx_out[:, None], axis=1)[:, 0]
    assert bool(jnp.all(chosen <= jnp.min(d_ref, axis=1) + 1e-3)), "argmin mismatch"
    # perplexity matches the value recomputed from the returned encodings
    avg_ref = jnp.mean(enc_out, axis=0)
    perp_ref = jnp.exp(-jnp.sum(avg_ref * jnp.log(avg_ref + 1e-10)))
    assert bool(jnp.allclose(out[2], perp_ref, atol=1e-3, rtol=1e-4)), "perplexity mismatch"

    print("KERNEL_OK")
</pallas_src>

<mosaic_0001>
module attributes {stable_mosaic.version = 11 : i64} {
  func.func @_vq_kernel(%arg0: i32, %arg1: memref<64x30xf32, #tpu.memory_space<vmem>>, %arg2: memref<128x30xf32, #tpu.memory_space<vmem>>, %arg3: memref<64x30xf32, #tpu.memory_space<vmem>>, %arg4: memref<64x128xf32, #tpu.memory_space<vmem>>, %arg5: memref<64x128xf32, #tpu.memory_space<vmem>>, %arg6: memref<64x1xi32, #tpu.memory_space<vmem>>, %arg7: memref<1x8x128xf32, #tpu.memory_space<vmem>>) attributes {dimension_semantics = [#tpu.dimension_semantics<parallel>], iteration_bounds = array<i64: 1>, scalar_prefetch = 0 : i64, scratch_operands = 0 : i64, tpu.core_type = #tpu.core_type<tc>, window_params = [{transform_indices = @transform_0, window_bounds = array<i64: 64, 30>}, {pipeline_mode = #tpu.pipeline_mode<synchronous>, transform_indices = @transform_1, window_bounds = array<i64: 128, 30>}, {transform_indices = @transform_2, window_bounds = array<i64: 64, 30>}, {transform_indices = @transform_3, window_bounds = array<i64: 64, 128>}, {transform_indices = @transform_4, window_bounds = array<i64: 64, 128>}, {transform_indices = @transform_5, window_bounds = array<i64: 64, 1>}, {transform_indices = @transform_6, window_bounds = array<i64: 1, 8, 128>}]} {
    %c0 = arith.constant 0 : index
    %c0_0 = arith.constant 0 : index
    %0 = vector.load %arg1[%c0, %c0_0] : memref<64x30xf32, #tpu.memory_space<vmem>>, vector<64x30xf32>
    %c0_1 = arith.constant 0 : index
    %c0_2 = arith.constant 0 : index
    %1 = vector.load %arg2[%c0_1, %c0_2] : memref<128x30xf32, #tpu.memory_space<vmem>>, vector<128x30xf32>
    %2 = arith.mulf %0, %0 : vector<64x30xf32>
    %cst = arith.constant dense<0.000000e+00> : vector<64xf32>
    %3 = vector.multi_reduction <add>, %2, %cst [1] : vector<64x30xf32> to vector<64xf32>
    %4 = vector.shape_cast %3 : vector<64xf32> to vector<64x1xf32>
    %5 = arith.mulf %1, %1 : vector<128x30xf32>
    %cst_3 = arith.constant dense<0.000000e+00> : vector<128xf32>
    %6 = vector.multi_reduction <add>, %5, %cst_3 [1] : vector<128x30xf32> to vector<128xf32>
    %7 = vector.shape_cast %6 : vector<128xf32> to vector<1x128xf32>
    %cst_4 = arith.constant dense<0.000000e+00> : vector<64x128xf32>
    %8 = tpu.matmul %0, %1, %cst_4 {dimension_numbers = #tpu.dot_dimension_numbers<[1], [1], [0], [0], [0, 0, 1, 0], [], []>} : vector<64x30xf32>, vector<128x30xf32>, vector<64x128xf32> -> vector<64x128xf32>
    %9 = vector.broadcast %4 : vector<64x1xf32> to vector<64x128xf32>
    %10 = vector.broadcast %7 : vector<1x128xf32> to vector<64x128xf32>
    %11 = arith.addf %9, %10 : vector<64x128xf32>
    %cst_5 = arith.constant 2.000000e+00 : f32
    %12 = vector.broadcast %cst_5 : f32 to vector<64x128xf32>
    %13 = arith.mulf %12, %8 : vector<64x128xf32>
    %14 = arith.subf %11, %13 : vector<64x128xf32>
    %c0_6 = arith.constant 0 : index
    %c0_7 = arith.constant 0 : index
    %15 = vector.load %arg4[%c0_6, %c0_7] : memref<64x128xf32, #tpu.memory_space<vmem>>, vector<64x128xf32>
    tpu.vector_store %arg4[%c0_6, %c0_7], %14 {strides = array<i32>} : memref<64x128xf32, #tpu.memory_space<vmem>>, vector<64x128xf32>,
    %16 = tpu.iota {dimensions = array<i32: 1>} : vector<64x128xi32>
    %c64_i32 = arith.constant 64 : i32
    %17 = vector.broadcast %c64_i32 : i32 to vector<64x128xi32>
    %18 = arith.cmpi slt, %16, %17 : vector<64x128xi32>
    %cst_8 = arith.constant 0x7F800000 : f32
    %19 = vector.broadcast %cst_8 : f32 to vector<64x128xf32>
    %20 = arith.select %18, %14, %19 : vector<64x128xi1>, vector<64x128xf32>
    %cst_9 = arith.constant dense<0x7F800000> : vector<64xf32>
    %21 = vector.multi_reduction <minimumf>, %20, %cst_9 [1] : vector<64x128xf32> to vector<64xf32>
    %22 = vector.shape_cast %21 : vector<64xf32> to vector<64x1xf32>
    %23 = vector.broadcast %22 : vector<64x1xf32> to vector<64x128xf32>
    %24 = arith.cmpf oeq, %20, %23 : vector<64x128xf32>
    %c128_i32 = arith.constant 128 : i32
    %25 = vector.broadcast %c128_i32 : i32 to vector<64x128xi32>
    %26 = arith.select %24, %16, %25 : vector<64x128xi1>, vector<64x128xi32>
    %cst_10 = arith.constant dense<2147483647> : vector<64xi32>
    %27 = vector.multi_reduction <minsi>, %26, %cst_10 [1] : vector<64x128xi32> to vector<64xi32>
    %28 = vector.shape_cast %27 : vector<64xi32> to vector<64x1xi32>
    %c0_11 = arith.constant 0 : index
    %c0_12 = arith.constant 0 : index
    %29 = vector.load %arg6[%c0_11, %c0_12] : memref<64x1xi32, #tpu.memory_space<vmem>>, vector<64x1xi32>
    tpu.vector_store %arg6[%c0_11, %c0_12], %28 {strides = array<i32>} : memref<64x1xi32, #tpu.memory_space<vmem>>, vector<64x1xi32>,
    %30 = vector.broadcast %28 : vector<64x1xi32> to vector<64x128xi32>
    %31 = arith.cmpi eq, %16, %30 : vector<64x128xi32>
    %32 = arith.extui %31 : vector<64x128xi1> to vector<64x128xi32>
    %33 = arith.sitofp %32 : vector<64x128xi32> to vector<64x128xf32>
    %c0_13 = arith.constant 0 : index
    %c0_14 = arith.constant 0 : index
    %34 = vector.load %arg5[%c0_13, %c0_14] : memref<64x128xf32, #tpu.memory_space<vmem>>, vector<64x128xf32>
    tpu.vector_store %arg5[%c0_13, %c0_14], %33 {strides = array<i32>} : memref<64x128xf32, #tpu.memory_space<vmem>>, vector<64x128xf32>,
    %cst_15 = arith.constant dense<0.000000e+00> : vector<64x30xf32>
    %35 = tpu.matmul %33, %1, %cst_15 {dimension_numbers = #tpu.dot_dimension_numbers<[1], [0], [0], [1], [0, 0, 1, 1], [], []>} : vector<64x128xf32>, vector<128x30xf32>, vector<64x30xf32> -> vector<64x30xf32>
    %c0_16 = arith.constant 0 : index
    %c0_17 = arith.constant 0 : index
    %36 = vector.load %arg3[%c0_16, %c0_17] : memref<64x30xf32, #tpu.memory_space<vmem>>, vector<64x30xf32>
    tpu.vector_store %arg3[%c0_16, %c0_17], %35 {strides = array<i32>} : memref<64x30xf32, #tpu.memory_space<vmem>>, vector<64x30xf32>,
    %37 = tpu.iota {dimensions = array<i32: 0>} : vector<64x1xi32>
    %c64_i32_18 = arith.constant 64 : i32
    %38 = arith.muli %arg0, %c64_i32_18 : i32
    %39 = vector.broadcast %38 : i32 to vector<64x1xi32>
    %40 = arith.addi %37, %39 : vector<64x1xi32>
    %c60_i32 = arith.constant 60 : i32
    %41 = vector.broadcast %c60_i32 : i32 to vector<64x1xi32>
    %42 = arith.cmpi slt, %40, %41 : vector<64x1xi32>
    %cst_19 = arith.constant 0.000000e+00 : f32
    %43 = vector.shape_cast %42 : vector<64x1xi1> to vector<64x1xi1>
    %44 = vector.broadcast %43 : vector<64x1xi1> to vector<64x128xi1>
    %45 = vector.broadcast %cst_19 : f32 to vector<64x128xf32>
    %46 = arith.select %44, %33, %45 : vector<64x128xi1>, vector<64x128xf32>
    %cst_20 = arith.constant dense<0.000000e+00> : vector<128xf32>
    %47 = vector.multi_reduction <add>, %46, %cst_20 [0] : vector<64x128xf32> to vector<128xf32>
    %48 = vector.shape_cast %47 : vector<128xf32> to vector<1x128xf32>
    %49 = vector.shape_cast %48 : vector<1x128xf32> to vector<1x1x128xf32>
    %50 = vector.shape_cast %49 : vector<1x1x128xf32> to vector<1x1x128xf32>
    %51 = vector.broadcast %50 : vector<1x1x128xf32> to vector<1x8x128xf32>
    %c0_21 = arith.constant 0 : index
    %c0_22 = arith.constant 0 : index
    %c0_23 = arith.constant 0 : index
    %52 = vector.load %arg7[%c0_21, %c0_22, %c0_23] : memref<1x8x128xf32, #tpu.memory_space<vmem>>, vector<1x8x128xf32>
    tpu.vector_store %arg7[%c0_21, %c0_22, %c0_23], %51 {strides = array<i32>} : memref<1x8x128xf32, #tpu.memory_space<vmem>>, vector<1x8x128xf32>,
    return
  }
  func.func @transform_0(%arg0: i32) -> (i32, i32) {
    %c0_i32 = arith.constant 0 : i32
    %c0_i32_0 = arith.constant 0 : i32
    return %arg0, %c0_i32 : i32, i32
  }
  func.func @transform_1(%arg0: i32) -> (i32, i32) {
    %c0_i32 = arith.constant 0 : i32
    %c0_i32_0 = arith.constant 0 : i32
    %c0_i32_1 = arith.constant 0 : i32
    return %c0_i32, %c0_i32_0 : i32, i32
  }
  func.func @transform_2(%arg0: i32) -> (i32, i32) {
    %c0_i32 = arith.constant 0 : i32
    %c0_i32_0 = arith.constant 0 : i32
    return %arg0, %c0_i32 : i32, i32
  }
  func.func @transform_3(%arg0: i32) -> (i32, i32) {
    %c0_i32 = arith.constant 0 : i32
    %c0_i32_0 = arith.constant 0 : i32
    return %arg0, %c0_i32 : i32, i32
  }
  func.func @transform_4(%arg0: i32) -> (i32, i32) {
    %c0_i32 = arith.constant 0 : i32
    %c0_i32_0 = arith.constant 0 : i32
    return %arg0, %c0_i32 : i32, i32
  }
  func.func @transform_5(%arg0: i32) -> (i32, i32) {
    %c0_i32 = arith.constant 0 : i32
    %c0_i32_0 = arith.constant 0 : i32
    return %arg0, %c0_i32 : i32, i32
  }
  func.func @transform_6(%arg0: i32) -> (i32, i32, i32) {
    %c0_i32 = arith.constant 0 : i32
    %c0_i32_0 = arith.constant 0 : i32
    %c0_i32_1 = arith.constant 0 : i32
    return %arg0, %c0_i32, %c0_i32_0 : i32, i32, i32
  }
}

</mosaic_0001>

<llo_original>
// kernel: vector_quantizer_forward.1
$region0: #{vector_quantizer_forward.1}
  #allocation0 [shape = 'u32[]', space=smem, size = 0x4, offset = 0x4, fixed_abs, tag = 'smem constant byte address 0x4 - core index']
  #allocation1 [shape = 'u32[144,128]{1,0:T(1,128)}', space=vmem, size = 0x12000, scoped, tag = 'internal scratch']
  %s0 = inlined_call_operand.vmem [shape: f32[64,30], index: 0, kind: input, shape index: {}]
  %s1 = inlined_call_operand.vmem [shape: f32[128,30], index: 1, kind: input, shape index: {}]
  %s2 = inlined_call_operand.vmem [shape: f32[64,30], index: 2, kind: output, shape index: {0}]
  %s3 = inlined_call_operand.vmem [shape: f32[64,128], index: 3, kind: output, shape index: {1}]
  %s4 = inlined_call_operand.vmem [shape: f32[64,128], index: 4, kind: output, shape index: {2}]
  %s5 = inlined_call_operand.vmem [shape: s32[64,1], index: 5, kind: output, shape index: {3}]
  %s6 = inlined_call_operand.vmem [shape: f32[1,8,128], index: 6, kind: output, shape index: {4}]
  %7 = xla_tuple %s2, %s3, %s4, %s5, %s6
  %s8 = sld [smem:[#allocation0]]
  $region50: #{vector_quantizer_forward.1} parent=0
    _
  %s10 = ssub.s32 1, %s8
  %s11 = scalar_select 0, %s10, %s8
  // Predicated region
  $region2: #{vector_quantizer_forward.1} parent=0 // pred_check
    _
  $region3: #{vector_quantizer_forward.1} parent=0 // pred_check_branch
    %13 = sbr.rel (0) target = $region5
  $region4: #{vector_quantizer_forward.1} parent=0 // pred_region
    _
  $region5: #{vector_quantizer_forward.1} parent=0 // pred_fallthru
    _
  // Predicated region
  $region6: #{vector_quantizer_forward.1} parent=0 // pred_check
    _
  $region7: #{vector_quantizer_forward.1} parent=0 // pred_check_branch
    %15 = sbr.rel (0) target = $region9
  $region8: #{vector_quantizer_forward.1} parent=0 // pred_region
    _
  $region9: #{vector_quantizer_forward.1} parent=0 // pred_fallthru
    _
  %v16 = vld [vmem:[%s0] sm:$0xff]
  %v17 = vld [vmem:[%s0 + $0x8] sm:$0xff]
  %v18 = vld [vmem:[%s0 + $0x10] sm:$0xff]
  %v19 = vld [vmem:[%s0 + $0x18] sm:$0xff]
  %v20 = vld [vmem:[%s0 + $0x20] sm:$0xff]
  %v21 = vld [vmem:[%s0 + $0x28] sm:$0xff]
  %v22 = vld [vmem:[%s0 + $0x30] sm:$0xff]
  %v23 = vld [vmem:[%s0 + $0x38] sm:$0xff]
  %v24 = vld [vmem:[%s1] sm:$0xff]
  %v25 = vld [vmem:[%s1 + $0x8] sm:$0xff]
  %v26 = vld [vmem:[%s1 + $0x10] sm:$0xff]
  %v27 = vld [vmem:[%s1 + $0x18] sm:$0xff]
  %v28 = vld [vmem:[%s1 + $0x20] sm:$0xff]
  %v29 = vld [vmem:[%s1 + $0x28] sm:$0xff]
  %v30 = vld [vmem:[%s1 + $0x30] sm:$0xff]
  %v31 = vld [vmem:[%s1 + $0x38] sm:$0xff]
  %v32 = vld [vmem:[%s1 + $0x40] sm:$0xff]
  %v33 = vld [vmem:[%s1 + $0x48] sm:$0xff]
  %v34 = vld [vmem:[%s1 + $0x50] sm:$0xff]
  %v35 = vld [vmem:[%s1 + $0x58] sm:$0xff]
  %v36 = vld [vmem:[%s1 + $0x60] sm:$0xff]
  %v37 = vld [vmem:[%s1 + $0x68] sm:$0xff]
  %v38 = vld [vmem:[%s1 + $0x70] sm:$0xff]
  %v39 = vld [vmem:[%s1 + $0x78] sm:$0xff]
  %v40 = vmul.f32 %v16, %v16
  %v41 = vmul.f32 %v17, %v17
  %v42 = vmul.f32 %v18, %v18
  %v43 = vmul.f32 %v19, %v19
  %v44 = vmul.f32 %v20, %v20
  %v45 = vmul.f32 %v21, %v21
  %v46 = vmul.f32 %v22, %v22
  %v47 = vmul.f32 %v23, %v23
  %vm48 = vcmask 244736
  %v49 = vsel %vm48, %v40, 0.0
  %50 = vadd.xlane.f32.xlu0 %v49
  %v51 = vpop.xlane.xlu0 %50
  %v52 = vsel %vm48, %v41, 0.0
  %53 = vadd.xlane.f32.xlu0 %v52
  %v54 = vpop.xlane.xlu0 %53
  %v55 = vsel %vm48, %v42, 0.0
  %56 = vadd.xlane.f32.xlu0 %v55
  %v57 = vpop.xlane.xlu0 %56
  %v58 = vsel %vm48, %v43, 0.0
  %59 = vadd.xlane.f32.xlu0 %v58
  %v60 = vpop.xlane.xlu0 %59
  %v61 = vsel %vm48, %v44, 0.0
  %62 = vadd.xlane.f32.xlu0 %v61
  %v63 = vpop.xlane.xlu0 %62
  %v64 = vsel %vm48, %v45, 0.0
  %65 = vadd.xlane.f32.xlu0 %v64
  %v66 = vpop.xlane.xlu0 %65
  %v67 = vsel %vm48, %v46, 0.0
  %68 = vadd.xlane.f32.xlu0 %v67
  %v69 = vpop.xlane.xlu0 %68
  %v70 = vsel %vm48, %v47, 0.0
  %71 = vadd.xlane.f32.xlu0 %v70
  %v72 = vpop.xlane.xlu0 %71
  %v73 = vmul.f32 %v24, %v24
  %v74 = vmul.f32 %v25, %v25
  %v75 = vmul.f32 %v26, %v26
  %v76 = vmul.f32 %v27, %v27
  %v77 = vmul.f32 %v28, %v28
  %v78 = vmul.f32 %v29, %v29
  %v79 = vmul.f32 %v30, %v30
  %v80 = vmul.f32 %v31, %v31
  %v81 = vmul.f32 %v32, %v32
  %v82 = vmul.f32 %v33, %v33
  %v83 = vmul.f32 %v34, %v34
  %v84 = vmul.f32 %v35, %v35
  %v85 = vmul.f32 %v36, %v36
  %v86 = vmul.f32 %v37, %v37
  %v87 = vmul.f32 %v38, %v38
  %v88 = vmul.f32 %v39, %v39
  %v89 = vsel %vm48, %v73, 0.0
  %90 = vadd.xlane.f32.xlu0 %v89
  %v91 = vpop.xlane.xlu0 %90
  %v92 = vsel %vm48, %v74, 0.0
  %93 = vadd.xlane.f32.xlu0 %v92
  %v94 = vpop.xlane.xlu0 %93
  %v95 = vsel %vm48, %v75, 0.0
  %96 = vadd.xlane.f32.xlu0 %v95
  %v97 = vpop.xlane.xlu0 %96
  %v98 = vsel %vm48, %v76, 0.0
  %99 = vadd.xlane.f32.xlu0 %v98
  %v100 = vpop.xlane.xlu0 %99
  %v101 = vsel %vm48, %v77, 0.0
  %102 = vadd.xlane.f32.xlu0 %v101
  %v103 = vpop.xlane.xlu0 %102
  %v104 = vsel %vm48, %v78, 0.0
  %105 = vadd.xlane.f32.xlu0 %v104
  %v106 = vpop.xlane.xlu0 %105
  %v107 = vsel %vm48, %v79, 0.0
  %108 = vadd.xlane.f32.xlu0 %v107
  %v109 = vpop.xlane.xlu0 %108
  %v110 = vsel %vm48, %v80, 0.0
  %111 = vadd.xlane.f32.xlu0 %v110
  %v112 = vpop.xlane.xlu0 %111
  %v113 = vsel %vm48, %v81, 0.0
  %114 = vadd.xlane.f32.xlu0 %v113
  %v115 = vpop.xlane.xlu0 %114
  %v116 = vsel %vm48, %v82, 0.0
  %117 = vadd.xlane.f32.xlu0 %v116
  %v118 = vpop.xlane.xlu0 %117
  %v119 = vsel %vm48, %v83, 0.0
  %120 = vadd.xlane.f32.xlu0 %v119
  %v121 = vpop.xlane.xlu0 %120
  %v122 = vsel %vm48, %v84, 0.0
  %123 = vadd.xlane.f32.xlu0 %v122
  %v124 = vpop.xlane.xlu0 %123
  %v125 = vsel %vm48, %v85, 0.0
  %126 = vadd.xlane.f32.xlu0 %v125
  %v127 = vpop.xlane.xlu0 %126
  %v128 = vsel %vm48, %v86, 0.0
  %129 = vadd.xlane.f32.xlu0 %v128
  %v130 = vpop.xlane.xlu0 %129
  %v131 = vsel %vm48, %v87, 0.0
  %132 = vadd.xlane.f32.xlu0 %v131
  %v133 = vpop.xlane.xlu0 %132
  %v134 = vsel %vm48, %v88, 0.0
  %135 = vadd.xlane.f32.xlu0 %v134
  %v136 = vpop.xlane.xlu0 %135
  %v138 = vsel %vm48, %v16, 0
  %v141 = vsel %vm48, %v17, 0
  %v144 = vsel %vm48, %v18, 0
  %v147 = vsel %vm48, %v19, 0
  %v150 = vsel %vm48, %v20, 0
  %v153 = vsel %vm48, %v21, 0
  %v156 = vsel %vm48, %v22, 0
  %v159 = vsel %vm48, %v23, 0
  %v162 = vsel %vm48, %v24, 0
  %v165 = vsel %vm48, %v25, 0
  %v168 = vsel %vm48, %v26, 0
  %v171 = vsel %vm48, %v27, 0
  %v174 = vsel %vm48, %v28, 0
  %v177 = vsel %vm48, %v29, 0
  %v180 = vsel %vm48, %v30, 0
  %v183 = vsel %vm48, %v31, 0
  %v186 = vsel %vm48, %v32, 0
  %v189 = vsel %vm48, %v33, 0
  %v192 = vsel %vm48, %v34, 0
  %v195 = vsel %vm48, %v35, 0
  %v198 = vsel %vm48, %v36, 0
  %v201 = vsel %vm48, %v37, 0
  %v204 = vsel %vm48, %v38, 0
  %v207 = vsel %vm48, %v39, 0
  %209 = vmatprep.subr.mxu0 0.0
  %210 = vmatpush1.xpose.msra.mxu0 %v207
  %211 = vmatprep.subr.mxu0 0.0
  %212 = vmatpush1.xpose.msra.mxu0 %v204
  %213 = vmatprep.subr.mxu0 0.0
  %214 = vmatpush1.xpose.msra.mxu0 %v201
  %215 = vmatprep.subr.mxu0 0.0
  %216 = vmatpush1.xpose.msra.mxu0 %v198
  %217 = vmatprep.subr.mxu0 0.0
  %218 = vmatpush1.xpose.msra.mxu0 %v195
  %219 = vmatprep.subr.mxu0 0.0
  %220 = vmatpush1.xpose.msra.mxu0 %v192
  %221 = vmatprep.subr.mxu0 0.0
  %222 = vmatpush1.xpose.msra.mxu0 %v189
  %223 = vmatprep.subr.mxu0 0.0
  %224 = vmatpush1.xpose.msra.mxu0 %v186
  %225 = vmatprep.subr.mxu0 0.0
  %226 = vmatpush1.xpose.msra.mxu0 %v183
  %227 = vmatprep.subr.mxu0 0.0
  %228 = vmatpush1.xpose.msra.mxu0 %v180
  %229 = vmatprep.subr.mxu0 0.0
  %230 = vmatpush1.xpose.msra.mxu0 %v177
  %231 = vmatprep.subr.mxu0 0.0
  %232 = vmatpush1.xpose.msra.mxu0 %v174
  %233 = vmatprep.subr.mxu0 0.0
  %234 = vmatpush1.xpose.msra.mxu0 %v171
  %235 = vmatprep.subr.mxu0 0.0
  %236 = vmatpush1.xpose.msra.mxu0 %v168
  %237 = vmatprep.subr.mxu0 0.0
  %238 = vmatpush1.xpose.msra.mxu0 %v165
  %239 = vmatprep.subr.mxu0 0.0
  %240 = vmatpush1.xpose.msra.mxu0 %v162
  %241 = vmatprep.subr.mxu0 0.0
  %242 = vmatpush2.xpose.msra.mxu0 0.0
  %243 = vmatprep.subr.mxu0 0.0
  %244 = vmatpush2.xpose.msra.mxu0 0.0
  %245 = vmatprep.subr.mxu0 0.0
  %246 = vmatpush2.xpose.msra.mxu0 0.0
  %247 = vmatprep.subr.mxu0 0.0
  %248 = vmatpush2.xpose.msra.mxu0 0.0
  %249 = vmatprep.subr.mxu0 0.0
  %250 = vmatpush2.xpose.msra.mxu0 0.0
  %251 = vmatprep.subr.mxu0 0.0
  %252 = vmatpush2.xpose.msra.mxu0 0.0
  %253 = vmatprep.subr.mxu0 0.0
  %254 = vmatpush2.xpose.msra.mxu0 0.0
  %255 = vmatprep.subr.mxu0 0.0
  %256 = vmatpush2.xpose.msra.mxu0 0.0
  %257 = vmatprep.subr.mxu0 0.0
  %258 = vmatpush2.xpose.msra.mxu0 0.0
  %259 = vmatprep.subr.mxu0 0.0
  %260 = vmatpush2.xpose.msra.mxu0 0.0
  %261 = vmatprep.subr.mxu0 0.0
  %262 = vmatpush2.xpose.msra.mxu0 0.0
  %263 = vmatprep.subr.mxu0 0.0
  %264 = vmatpush2.xpose.msra.mxu0 0.0
  %265 = vmatprep.subr.mxu0 0.0
  %266 = vmatpush2.xpose.msra.mxu0 0.0
  %267 = vmatprep.subr.mxu0 0.0
  %268 = vmatpush2.xpose.msra.mxu0 0.0
  %269 = vmatprep.subr.mxu0 0.0
  %270 = vmatpush2.xpose.msra.mxu0 0.0
  %271 = vmatprep.subr.mxu0 0.0
  %272 = vmatpush2.xpose.msra.mxu0 0.0
  %273 = vmatprep.mubr.f32.mxu0 0.0
  %274 = vmatmul.mubr.f32.gmra.mxu0 %v138
  %v275 = vpop.f32.mrf.mxu0
  %v276 = vadd.f32 0.0, %v275
  %v277 = vpop.f32.mrf.mxu0
  %278 = vmatprep.mubr.f32.mxu0 0.0
  %279 = vmatmul.mubr.f32.gmra.mxu0 %v141
  %v280 = vpop.f32.mrf.mxu0
  %v281 = vadd.f32 0.0, %v280
  %v282 = vpop.f32.mrf.mxu0
  %283 = vmatprep.mubr.f32.mxu0 0.0
  %284 = vmatmul.mubr.f32.gmra.mxu0 %v144
  %v285 = vpop.f32.mrf.mxu0
  %v286 = vadd.f32 0.0, %v285
  %v287 = vpop.f32.mrf.mxu0
  %288 = vmatprep.mubr.f32.mxu0 0.0
  %289 = vmatmul.mubr.f32.gmra.mxu0 %v147
  %v290 = vpop.f32.mrf.mxu0
  %v291 = vadd.f32 0.0, %v290
  %v292 = vpop.f32.mrf.mxu0
  %293 = vmatprep.mubr.f32.mxu0 0.0
  %294 = vmatmul.mubr.f32.gmra.mxu0 %v150
  %v295 = vpop.f32.mrf.mxu0
  %v296 = vadd.f32 0.0, %v295
  %v297 = vpop.f32.mrf.mxu0
  %298 = vmatprep.mubr.f32.mxu0 0.0
  %299 = vmatmul.mubr.f32.gmra.mxu0 %v153
  %v300 = vpop.f32.mrf.mxu0
  %v301 = vadd.f32 0.0, %v300
  %v302 = vpop.f32.mrf.mxu0
  %303 = vmatprep.mubr.f32.mxu0 0.0
  %304 = vmatmul.mubr.f32.gmra.mxu0 %v156
  %v305 = vpop.f32.mrf.mxu0
  %v306 = vadd.f32 0.0, %v305
  %v307 = vpop.f32.mrf.mxu0
  %308 = vmatprep.mubr.f32.mxu0 0.0
  %309 = vmatmul.mubr.f32.gmra.mxu0 %v159
  %v310 = vpop.f32.mrf.mxu0
  %v311 = vadd.f32 0.0, %v310
  %v312 = vpop.f32.mrf.mxu0
  %313 = vdwg.mxu0
  %v330 = vlaneseq
  %v331 = vand.u32 %v330, 127
  %v332 = vlaneseq
  %v333 = vshrl.u32 %v332, 7
  %v334 = vsub.s32 %v331, %v333
  %v335 = vrot.slane %v91, %v334
  %v336 = vadd.s32 %v331, 4294967288
  %v337 = vlaneseq
  %v338 = vshrl.u32 %v337, 7
  %v339 = vsub.s32 %v336, %v338
  %v340 = vrot.slane %v94, %v339
  %vm341 = vcmask 130112
  %v342 = vsel %vm341, %v340, %v335
  %v343 = vadd.s32 %v331, 4294967280
  %v344 = vlaneseq
  %v345 = vshrl.u32 %v344, 7
  %v346 = vsub.s32 %v343, %v345
  %v347 = vrot.slane %v97, %v346
  %vm348 = vcmask 195712
  %v349 = vsel %vm348, %v347, %v342
  %v350 = vadd.s32 %v331, 4294967272
  %v351 = vlaneseq
  %v352 = vshrl.u32 %v351, 7
  %v353 = vsub.s32 %v350, %v352
  %v354 = vrot.slane %v100, %v353
  %vm355 = vcmask 261312
  %v356 = vsel %vm355, %v354, %v349
  %v357 = vadd.s32 %v331, 4294967264
  %v358 = vlaneseq
  %v359 = vshrl.u32 %v358, 7
  %v360 = vsub.s32 %v357, %v359
  %v361 = vrot.slane %v103, %v360
  %vm362 = vcmask 326912
  %v363 = vsel %vm362, %v361, %v356
  %v364 = vadd.s32 %v331, 4294967256
  %v365 = vlaneseq
  %v366 = vshrl.u32 %v365, 7
  %v367 = vsub.s32 %v364, %v366
  %v368 = vrot.slane %v106, %v367
  %vm369 = vcmask 392512
  %v370 = vsel %vm369, %v368, %v363
  %v371 = vadd.s32 %v331, 4294967248
  %v372 = vlaneseq
  %v373 = vshrl.u32 %v372, 7
  %v374 = vsub.s32 %v371, %v373
  %v375 = vrot.slane %v109, %v374
  %vm376 = vcmask 458112
  %v377 = vsel %vm376, %v375, %v370
  %v378 = vadd.s32 %v331, 4294967240
  %v379 = vlaneseq
  %v380 = vshrl.u32 %v379, 7
  %v381 = vsub.s32 %v378, %v380
  %v382 = vrot.slane %v112, %v381
  %vm383 = vcmask 523712
  %v384 = vsel %vm383, %v382, %v377
  %v385 = vadd.s32 %v331, 4294967232
  %v386 = vlaneseq
  %v387 = vshrl.u32 %v386, 7
  %v388 = vsub.s32 %v385, %v387
  %v389 = vrot.slane %v115, %v388
  %vm390 = vcmask 589312
  %v391 = vsel %vm390, %v389, %v384
  %v392 = vadd.s32 %v331, 4294967224
  %v393 = vlaneseq
  %v394 = vshrl.u32 %v393, 7
  %v395 = vsub.s32 %v392, %v394
  %v396 = vrot.slane %v118, %v395
  %vm397 = vcmask 654912
  %v398 = vsel %vm397, %v396, %v391
  %v399 = vadd.s32 %v331, 4294967216
  %v400 = vlaneseq
  %v401 = vshrl.u32 %v400, 7
  %v402 = vsub.s32 %v399, %v401
  %v403 = vrot.slane %v121, %v402
  %vm404 = vcmask 720512
  %v405 = vsel %vm404, %v403, %v398
  %v406 = vadd.s32 %v331, 4294967208
  %v407 = vlaneseq
  %v408 = vshrl.u32 %v407, 7
  %v409 = vsub.s32 %v406, %v408
  %v410 = vrot.slane %v124, %v409
  %vm411 = vcmask 786112
  %v412 = vsel %vm411, %v410, %v405
  %v413 = vadd.s32 %v331, 4294967200
  %v414 = vlaneseq
  %v415 = vshrl.u32 %v414, 7
  %v416 = vsub.s32 %v413, %v415
  %v417 = vrot.slane %v127, %v416
  %vm418 = vcmask 851712
  %v419 = vsel %vm418, %v417, %v412
  %v420 = vadd.s32 %v331, 4294967192
  %v421 = vlaneseq
  %v422 = vshrl.u32 %v421, 7
  %v423 = vsub.s32 %v420, %v422
  %v424 = vrot.slane %v130, %v423
  %vm425 = vcmask 917312
  %v426 = vsel %vm425, %v424, %v419
  %v427 = vadd.s32 %v331, 4294967184
  %v428 = vlaneseq
  %v429 = vshrl.u32 %v428, 7
  %v430 = vsub.s32 %v427, %v429
  %v431 = vrot.slane %v133, %v430
  %vm432 = vcmask 982912
  %v433 = vsel %vm432, %v431, %v426
  %v434 = vadd.s32 %v331, 4294967176
  %v435 = vlaneseq
  %v436 = vshrl.u32 %v435, 7
  %v437 = vsub.s32 %v434, %v436
  %v438 = vrot.slane %v136, %v437
  %vm439 = vcmask 1048512
  %v440 = vsel %vm439, %v438, %v433
  %vm441 = vcmask 1042434
  %v442 = vsel %vm441, %v440, %v440
  %vm443 = vcmask 1043459
  %v444 = vsel %vm443, %v440, %v442
  %vm445 = vcmask 1044484
  %v446 = vsel %vm445, %v440, %v444
  %vm447 = vcmask 1045509
  %v448 = vsel %vm447, %v440, %v446
  %vm449 = vcmask 1046534
  %v450 = vsel %vm449, %v440, %v448
  %vm451 = vcmask 1047559
  %v452 = vsel %vm451, %v440, %v450
  %v454 = vadd.f32 %v51, %v452
  %v455 = vadd.f32 %v54, %v452
  %v456 = vadd.f32 %v57, %v452
  %v457 = vadd.f32 %v60, %v452
  %v458 = vadd.f32 %v63, %v452
  %v459 = vadd.f32 %v66, %v452
  %v460 = vadd.f32 %v69, %v452
  %v461 = vadd.f32 %v72, %v452
  %v462 = vmul.f32 %v276, 2.0
  %v463 = vmul.f32 %v281, 2.0
  %v464 = vmul.f32 %v286, 2.0
  %v465 = vmul.f32 %v291, 2.0
  %v466 = vmul.f32 %v296, 2.0
  %v467 = vmul.f32 %v301, 2.0
  %v468 = vmul.f32 %v306, 2.0
  %v469 = vmul.f32 %v311, 2.0
  %v470 = vsub.f32 %v454, %v462
  %v471 = vsub.f32 %v455, %v463
  %v472 = vsub.f32 %v456, %v464
  %v473 = vsub.f32 %v457, %v465
  %v474 = vsub.f32 %v458, %v466
  %v475 = vsub.f32 %v459, %v467
  %v476 = vsub.f32 %v460, %v468
  %v477 = vsub.f32 %v461, %v469
  %478 = vst [vmem:[%s3] sm:$0xff] %v470
  %479 = vst [vmem:[%s3 + $0x8] sm:$0xff] %v471
  %480 = vst [vmem:[%s3 + $0x10] sm:$0xff] %v472
  %481 = vst [vmem:[%s3 + $0x18] sm:$0xff] %v473
  %482 = vst [vmem:[%s3 + $0x20] sm:$0xff] %v474
  %483 = vst [vmem:[%s3 + $0x28] sm:$0xff] %v475
  %484 = vst [vmem:[%s3 + $0x30] sm:$0xff] %v476
  %485 = vst [vmem:[%s3 + $0x38] sm:$0xff] %v477
  %vm486 = vcmp.lt.s32.totalorder %v331, 64
  %v487 = vsel %vm486, %v470, inf
  %v488 = vsel %vm486, %v471, inf
  %v489 = vsel %vm486, %v472, inf
  %v490 = vsel %vm486, %v473, inf
  %v491 = vsel %vm486, %v474, inf
  %v492 = vsel %vm486, %v475, inf
  %v493 = vsel %vm486, %v476, inf
  %v494 = vsel %vm486, %v477, inf
  %495 = vmin.xlane.f32.xlu0 %v487
  %v496 = vpop.xlane.xlu0 %495
  %497 = vmin.xlane.f32.xlu0 %v488
  %v498 = vpop.xlane.xlu0 %497
  %499 = vmin.xlane.f32.xlu0 %v489
  %v500 = vpop.xlane.xlu0 %499
  %501 = vmin.xlane.f32.xlu0 %v490
  %v502 = vpop.xlane.xlu0 %501
  %503 = vmin.xlane.f32.xlu0 %v491
  %v504 = vpop.xlane.xlu0 %503
  %505 = vmin.xlane.f32.xlu0 %v492
  %v506 = vpop.xlane.xlu0 %505
  %507 = vmin.xlane.f32.xlu0 %v493
  %v508 = vpop.xlane.xlu0 %507
  %509 = vmin.xlane.f32.xlu0 %v494
  %v510 = vpop.xlane.xlu0 %509
  %vm511 = vcmp.eq.f32.partialorder %v487, %v496
  %vm512 = vcmp.eq.f32.partialorder %v488, %v498
  %vm513 = vcmp.eq.f32.partialorder %v489, %v500
  %vm514 = vcmp.eq.f32.partialorder %v490, %v502
  %vm515 = vcmp.eq.f32.partialorder %v491, %v504
  %vm516 = vcmp.eq.f32.partialorder %v492, %v506
  %vm517 = vcmp.eq.f32.partialorder %v493, %v508
  %vm518 = vcmp.eq.f32.partialorder %v494, %v510
  %v519 = vsel %vm511, %v331, 128
  %v520 = vsel %vm512, %v331, 128
  %v521 = vsel %vm513, %v331, 128
  %v522 = vsel %vm514, %v331, 128
  %v523 = vsel %vm515, %v331, 128
  %v524 = vsel %vm516, %v331, 128
  %v525 = vsel %vm517, %v331, 128
  %v526 = vsel %vm518, %v331, 128
  %v527 = vand.u32 %v519, 65535
  %v528 = vshra.s32 %v519, 16
  %v529 = vcvt.s32.f32 %v527
  %v530 = vcvt.s32.f32 %v528
  %531 = vmin.xlane.f32.xlu0 %v530
  %v532 = vpop.xlane.xlu0 %531
  %vm533 = vcmp.eq.f32.partialorder %v530, %v532
  %v534 = vsel %vm533, %v529, inf
  %535 = vmin.xlane.f32.xlu0 %v534
  %v536 = vpop.xlane.xlu0 %535
  %v537 = vcvt.f32.s32 %v536
  %v538 = vcvt.f32.s32 %v532
  %v539 = vshll.u32 %v538, 16
  %v540 = vadd.s32 %v539, %v537
  %v541 = vand.u32 %v520, 65535
  %v542 = vshra.s32 %v520, 16
  %v543 = vcvt.s32.f32 %v541
  %v544 = vcvt.s32.f32 %v542
  %545 = vmin.xlane.f32.xlu0 %v544
  %v546 = vpop.xlane.xlu0 %545
  %vm547 = vcmp.eq.f32.partialorder %v544, %v546
  %v548 = vsel %vm547, %v543, inf
  %549 = vmin.xlane.f32.xlu0 %v548
  %v550 = vpop.xlane.xlu0 %549
  %v551 = vcvt.f32.s32 %v550
  %v552 = vcvt.f32.s32 %v546
  %v553 = vshll.u32 %v552, 16
  %v554 = vadd.s32 %v553, %v551
  %v555 = vand.u32 %v521, 65535
  %v556 = vshra.s32 %v521, 16
  %v557 = vcvt.s32.f32 %v555
  %v558 = vcvt.s32.f32 %v556
  %559 = vmin.xlane.f32.xlu0 %v558
  %v560 = vpop.xlane.xlu0 %559
  %vm561 = vcmp.eq.f32.partialorder %v558, %v560
  %v562 = vsel %vm561, %v557, inf
  %563 = vmin.xlane.f32.xlu0 %v562
  %v564 = vpop.xlane.xlu0 %563
  %v565 = vcvt.f32.s32 %v564
  %v566 = vcvt.f32.s32 %v560
  %v567 = vshll.u32 %v566, 16
  %v568 = vadd.s32 %v567, %v565
  %v569 = vand.u32 %v522, 65535
  %v570 = vshra.s32 %v522, 16
  %v571 = vcvt.s32.f32 %v569
  %v572 = vcvt.s32.f32 %v570
  %573 = vmin.xlane.f32.xlu0 %v572
  %v574 = vpop.xlane.xlu0 %573
  %vm575 = vcmp.eq.f32.partialorder %v572, %v574
  %v576 = vsel %vm575, %v571, inf
  %577 = vmin.xlane.f32.xlu0 %v576
  %v578 = vpop.xlane.xlu0 %577
  %v579 = vcvt.f32.s32 %v578
  %v580 = vcvt.f32.s32 %v574
  %v581 = vshll.u32 %v580, 16
  %v582 = vadd.s32 %v581, %v579
  %v583 = vand.u32 %v523, 65535
  %v584 = vshra.s32 %v523, 16
  %v585 = vcvt.s32.f32 %v583
  %v586 = vcvt.s32.f32 %v584
  %587 = vmin.xlane.f32.xlu0 %v586
  %v588 = vpop.xlane.xlu0 %587
  %vm589 = vcmp.eq.f32.partialorder %v586, %v588
  %v590 = vsel %vm589, %v585, inf
  %591 = vmin.xlane.f32.xlu0 %v590
  %v592 = vpop.xlane.xlu0 %591
  %v593 = vcvt.f32.s32 %v592
  %v594 = vcvt.f32.s32 %v588
  %v595 = vshll.u32 %v594, 16
  %v596 = vadd.s32 %v595, %v593
  %v597 = vand.u32 %v524, 65535
  %v598 = vshra.s32 %v524, 16
  %v599 = vcvt.s32.f32 %v597
  %v600 = vcvt.s32.f32 %v598
  %601 = vmin.xlane.f32.xlu0 %v600
  %v602 = vpop.xlane.xlu0 %601
  %vm603 = vcmp.eq.f32.partialorder %v600, %v602
  %v604 = vsel %vm603, %v599, inf
  %605 = vmin.xlane.f32.xlu0 %v604
  %v606 = vpop.xlane.xlu0 %605
  %v607 = vcvt.f32.s32 %v606
  %v608 = vcvt.f32.s32 %v602
  %v609 = vshll.u32 %v608, 16
  %v610 = vadd.s32 %v609, %v607
  %v611 = vand.u32 %v525, 65535
  %v612 = vshra.s32 %v525, 16
  %v613 = vcvt.s32.f32 %v611
  %v614 = vcvt.s32.f32 %v612
  %615 = vmin.xlane.f32.xlu0 %v614
  %v616 = vpop.xlane.xlu0 %615
  %vm617 = vcmp.eq.f32.partialorder %v614, %v616
  %v618 = vsel %vm617, %v613, inf
  %619 = vmin.xlane.f32.xlu0 %v618
  %v620 = vpop.xlane.xlu0 %619
  %v621 = vcvt.f32.s32 %v620
  %v622 = vcvt.f32.s32 %v616
  %v623 = vshll.u32 %v622, 16
  %v624 = vadd.s32 %v623, %v621
  %v625 = vand.u32 %v526, 65535
  %v626 = vshra.s32 %v526, 16
  %v627 = vcvt.s32.f32 %v625
  %v628 = vcvt.s32.f32 %v626
  %629 = vmin.xlane.f32.xlu0 %v628
  %v630 = vpop.xlane.xlu0 %629
  %vm631 = vcmp.eq.f32.partialorder %v628, %v630
  %v632 = vsel %vm631, %v627, inf
  %633 = vmin.xlane.f32.xlu0 %v632
  %v634 = vpop.xlane.xlu0 %633
  %v635 = vcvt.f32.s32 %v634
  %v636 = vcvt.f32.s32 %v630
  %v637 = vshll.u32 %v636, 16
  %v638 = vadd.s32 %v637, %v635
  %vm639 = vcmask 7168
  %640 = vst.msk [vmem:[%s5] sm:$0xff] %vm639, %v540
  %641 = vst.msk [vmem:[%s5 + $0x8] sm:$0xff] %vm639, %v554
  %642 = vst.msk [vmem:[%s5 + $0x10] sm:$0xff] %vm639, %v568
  %643 = vst.msk [vmem:[%s5 + $0x18] sm:$0xff] %vm639, %v582
  %644 = vst.msk [vmem:[%s5 + $0x20] sm:$0xff] %vm639, %v596
  %645 = vst.msk [vmem:[%s5 + $0x28] sm:$0xff] %vm639, %v610
  %646 = vst.msk [vmem:[%s5 + $0x30] sm:$0xff] %vm639, %v624
  %647 = vst.msk [vmem:[%s5 + $0x38] sm:$0xff] %vm639, %v638
  %vm648 = vcmp.eq.s32.totalorder %v331, %v540
  %vm649 = vcmp.eq.s32.totalorder %v331, %v554
  %vm650 = vcmp.eq.s32.totalorder %v331, %v568
  %vm651 = vcmp.eq.s32.totalorder %v331, %v582
  %vm652 = vcmp.eq.s32.totalorder %v331, %v596
  %vm653 = vcmp.eq.s32.totalorder %v331, %v610
  %vm654 = vcmp.eq.s32.totalorder %v331, %v624
  %vm655 = vcmp.eq.s32.totalorder %v331, %v638
  %v656 = vsel %vm648, 1, 0
  %v657 = vsel %vm649, 1, 0
  %v658 = vsel %vm650, 1, 0
  %v659 = vsel %vm651, 1, 0
  %v660 = vsel %vm652, 1, 0
  %v661 = vsel %vm653, 1, 0
  %v662 = vsel %vm654, 1, 0
  %v663 = vsel %vm655, 1, 0
  %v664 = vcvt.s32.f32 %v656
  %v665 = vcvt.s32.f32 %v657
  %v666 = vcvt.s32.f32 %v658
  %v667 = vcvt.s32.f32 %v659
  %v668 = vcvt.s32.f32 %v660
  %v669 = vcvt.s32.f32 %v661
  %v670 = vcvt.s32.f32 %v662
  %v671 = vcvt.s32.f32 %v663
  %672 = vst [vmem:[%s4] sm:$0xff] %v664
  %673 = vst [vmem:[%s4 + $0x8] sm:$0xff] %v665
  %674 = vst [vmem:[%s4 + $0x10] sm:$0xff] %v666
  %675 = vst [vmem:[%s4 + $0x18] sm:$0xff] %v667
  %676 = vst [vmem:[%s4 + $0x20] sm:$0xff] %v668
  %677 = vst [vmem:[%s4 + $0x28] sm:$0xff] %v669
  %678 = vst [vmem:[%s4 + $0x30] sm:$0xff] %v670
  %679 = vst [vmem:[%s4 + $0x38] sm:$0xff] %v671
  %680 = vmatprep.subr.mxu0 0.0
  %681 = vmatpush1.msra.mxu0 %v39
  %682 = vmatprep.subr.mxu0 0.0
  %683 = vmatpush1.msra.mxu0 %v38
  %684 = vmatprep.subr.mxu0 0.0
  %685 = vmatpush1.msra.mxu0 %v37
  %686 = vmatprep.subr.mxu0 0.0
  %687 = vmatpush1.msra.mxu0 %v36
  %688 = vmatprep.subr.mxu0 0.0
  %689 = vmatpush1.msra.mxu0 %v35
  %690 = vmatprep.subr.mxu0 0.0
  %691 = vmatpush1.msra.mxu0 %v34
  %692 = vmatprep.subr.mxu0 0.0
  %693 = vmatpush1.msra.mxu0 %v33
  %694 = vmatprep.subr.mxu0 0.0
  %695 = vmatpush1.msra.mxu0 %v32
  %696 = vmatprep.subr.mxu0 0.0
  %697 = vmatpush1.msra.mxu0 %v31
  %698 = vmatprep.subr.mxu0 0.0
  %699 = vmatpush1.msra.mxu0 %v30
  %700 = vmatprep.subr.mxu0 0.0
  %701 = vmatpush1.msra.mxu0 %v29
  %702 = vmatprep.subr.mxu0 0.0
  %703 = vmatpush1.msra.mxu0 %v28
  %704 = vmatprep.subr.mxu0 0.0
  %705 = vmatpush1.msra.mxu0 %v27
  %706 = vmatprep.subr.mxu0 0.0
  %707 = vmatpush1.msra.mxu0 %v26
  %708 = vmatprep.subr.mxu0 0.0
  %709 = vmatpush1.msra.mxu0 %v25
  %710 = vmatprep.subr.mxu0 0.0
  %711 = vmatpush1.msra.mxu0 %v24
  %712 = vmatprep.subr.mxu0 0.0
  %713 = vmatpush2.msra.mxu0 0.0
  %714 = vmatprep.subr.mxu0 0.0
  %715 = vmatpush2.msra.mxu0 0.0
  %716 = vmatprep.subr.mxu0 0.0
  %717 = vmatpush2.msra.mxu0 0.0
  %718 = vmatprep.subr.mxu0 0.0
  %719 = vmatpush2.msra.mxu0 0.0
  %720 = vmatprep.subr.mxu0 0.0
  %721 = vmatpush2.msra.mxu0 0.0
  %722 = vmatprep.subr.mxu0 0.0
  %723 = vmatpush2.msra.mxu0 0.0
  %724 = vmatprep.subr.mxu0 0.0
  %725 = vmatpush2.msra.mxu0 0.0
  %726 = vmatprep.subr.mxu0 0.0
  %727 = vmatpush2.msra.mxu0 0.0
  %728 = vmatprep.subr.mxu0 0.0
  %729 = vmatpush2.msra.mxu0 0.0
  %730 = vmatprep.subr.mxu0 0.0
  %731 = vmatpush2.msra.mxu0 0.0
  %732 = vmatprep.subr.mxu0 0.0
  %733 = vmatpush2.msra.mxu0 0.0
  %734 = vmatprep.subr.mxu0 0.0
  %735 = vmatpush2.msra.mxu0 0.0
  %736 = vmatprep.subr.mxu0 0.0
  %737 = vmatpush2.msra.mxu0 0.0
  %738 = vmatprep.subr.mxu0 0.0
  %739 = vmatpush2.msra.mxu0 0.0
  %740 = vmatprep.subr.mxu0 0.0
  %741 = vmatpush2.msra.mxu0 0.0
  %742 = vmatprep.subr.mxu0 0.0
  %743 = vmatpush2.msra.mxu0 0.0
  %744 = vmatprep.mubr.f32.mxu0 0.0
  %745 = vmatmul.mubr.f32.gmra.mxu0 %v664
  %v746 = vpop.f32.mrf.mxu0
  %v747 = vadd.f32 0.0, %v746
  %v748 = vpop.f32.mrf.mxu0
  %749 = vmatprep.mubr.f32.mxu0 0.0
  %750 = vmatmul.mubr.f32.gmra.mxu0 %v665
  %v751 = vpop.f32.mrf.mxu0
  %v752 = vadd.f32 0.0, %v751
  %v753 = vpop.f32.mrf.mxu0
  %754 = vmatprep.mubr.f32.mxu0 0.0
  %755 = vmatmul.mubr.f32.gmra.mxu0 %v666
  %v756 = vpop.f32.mrf.mxu0
  %v757 = vadd.f32 0.0, %v756
  %v758 = vpop.f32.mrf.mxu0
  %759 = vmatprep.mubr.f32.mxu0 0.0
  %760 = vmatmul.mubr.f32.gmra.mxu0 %v667
  %v761 = vpop.f32.mrf.mxu0
  %v762 = vadd.f32 0.0, %v761
  %v763 = vpop.f32.mrf.mxu0
  %764 = vmatprep.mubr.f32.mxu0 0.0
  %765 = vmatmul.mubr.f32.gmra.mxu0 %v668
  %v766 = vpop.f32.mrf.mxu0
  %v767 = vadd.f32 0.0, %v766
  %v768 = vpop.f32.mrf.mxu0
  %769 = vmatprep.mubr.f32.mxu0 0.0
  %770 = vmatmul.mubr.f32.gmra.mxu0 %v669
  %v771 = vpop.f32.mrf.mxu0
  %v772 = vadd.f32 0.0, %v771
  %v773 = vpop.f32.mrf.mxu0
  %774 = vmatprep.mubr.f32.mxu0 0.0
  %775 = vmatmul.mubr.f32.gmra.mxu0 %v670
  %v776 = vpop.f32.mrf.mxu0
  %v777 = vadd.f32 0.0, %v776
  %v778 = vpop.f32.mrf.mxu0
  %779 = vmatprep.mubr.f32.mxu0 0.0
  %780 = vmatmul.mubr.f32.gmra.mxu0 %v671
  %v781 = vpop.f32.mrf.mxu0
  %v782 = vadd.f32 0.0, %v781
  %v783 = vpop.f32.mrf.mxu0
  %784 = vdwg.mxu0
  %785 = vst.msk [vmem:[%s2] sm:$0xff] %vm48, %v747
  %786 = vst.msk [vmem:[%s2 + $0x8] sm:$0xff] %vm48, %v752
  %787 = vst.msk [vmem:[%s2 + $0x10] sm:$0xff] %vm48, %v757
  %788 = vst.msk [vmem:[%s2 + $0x18] sm:$0xff] %vm48, %v762
  %789 = vst.msk [vmem:[%s2 + $0x20] sm:$0xff] %vm48, %v767
  %790 = vst.msk [vmem:[%s2 + $0x28] sm:$0xff] %vm48, %v772
  %791 = vst.msk [vmem:[%s2 + $0x30] sm:$0xff] %vm48, %v777
  %792 = vst.msk [vmem:[%s2 + $0x38] sm:$0xff] %vm48, %v782
  %v793 = vlaneseq
  %v794 = vshrl.u32 %v793, 7
  %v795 = vadd.s32 %v794, 8
  %v796 = vadd.s32 %v794, 16
  %v797 = vadd.s32 %v794, 24
  %v798 = vadd.s32 %v794, 32
  %v799 = vadd.s32 %v794, 40
  %v800 = vadd.s32 %v794, 48
  %v801 = vadd.s32 %v794, 56
  %s802 = smul.u32 0, 64
  %v803 = vstv %s802
  %v804 = vadd.s32 %v794, %v803
  %v805 = vadd.s32 %v795, %v803
  %v806 = vadd.s32 %v796, %v803
  %v807 = vadd.s32 %v797, %v803
  %v808 = vadd.s32 %v798, %v803
  %v809 = vadd.s32 %v799, %v803
  %v810 = vadd.s32 %v800, %v803
  %v811 = vadd.s32 %v801, %v803
  %vm812 = vcmp.lt.s32.totalorder %v804, 60
  %vm813 = vcmp.lt.s32.totalorder %v805, 60
  %vm814 = vcmp.lt.s32.totalorder %v806, 60
  %vm815 = vcmp.lt.s32.totalorder %v807, 60
  %vm816 = vcmp.lt.s32.totalorder %v808, 60
  %vm817 = vcmp.lt.s32.totalorder %v809, 60
  %vm818 = vcmp.lt.s32.totalorder %v810, 60
  %vm819 = vcmp.lt.s32.totalorder %v811, 60
  %v820 = vsel %vm812, 1, 0
  %v821 = vsel %vm813, 1, 0
  %v822 = vsel %vm814, 1, 0
  %v823 = vsel %vm815, 1, 0
  %v824 = vsel %vm816, 1, 0
  %v825 = vsel %vm817, 1, 0
  %v826 = vsel %vm818, 1, 0
  %v827 = vsel %vm819, 1, 0
  %vm828 = vcmp.eq.s32.totalorder %v820, 1
  %vm829 = vcmp.eq.s32.totalorder %v821, 1
  %vm830 = vcmp.eq.s32.totalorder %v822, 1
  %vm831 = vcmp.eq.s32.totalorder %v823, 1
  %vm832 = vcmp.eq.s32.totalorder %v824, 1
  %vm833 = vcmp.eq.s32.totalorder %v825, 1
  %vm834 = vcmp.eq.s32.totalorder %v826, 1
  %vm835 = vcmp.eq.s32.totalorder %v827, 1
  %v836 = vsel %vm828, %v664, 0.0
  %v837 = vsel %vm829, %v665, 0.0
  %v838 = vsel %vm830, %v666, 0.0
  %v839 = vsel %vm831, %v667, 0.0
  %v840 = vsel %vm832, %v668, 0.0
  %v841 = vsel %vm833, %v669, 0.0
  %v842 = vsel %vm834, %v670, 0.0
  %v843 = vsel %vm835, %v671, 0.0
  %v844 = vadd.f32 %v836, %v837
  %v845 = vadd.f32 %v844, %v838
  %v846 = vadd.f32 %v845, %v839
  %v847 = vadd.f32 %v846, %v840
  %v848 = vadd.f32 %v847, %v841
  %v849 = vadd.f32 %v848, %v842
  %v850 = vadd.f32 %v849, %v843
  %v851 = vrot.slane %v850, 4
  %v852 = vadd.f32 %v850, %v851
  %v853 = vrot.slane %v852, 2
  %v854 = vadd.f32 %v852, %v853
  %v855 = vrot.slane %v854, 1
  %v856 = vadd.f32 %v854, %v855
  %857 = vst [vmem:[%s6] sm:$0xff] %v856
  // Predicated region
  $region10: #{vector_quantizer_forward.1} parent=0 // pred_check
    _
  $region11: #{vector_quantizer_forward.1} parent=0 // pred_check_branch
    %859 = sbr.rel (0) target = $region13
  $region12: #{vector_quantizer_forward.1} parent=0 // pred_region
    _
  $region13: #{vector_quantizer_forward.1} parent=0 // pred_fallthru
    _
  // Predicated region
  $region14: #{vector_quantizer_forward.1} parent=0 // pred_check
    _
  $region15: #{vector_quantizer_forward.1} parent=0 // pred_check_branch
    %861 = sbr.rel (0) target = $region17
  $region16: #{vector_quantizer_forward.1} parent=0 // pred_region
    _
  $region17: #{vector_quantizer_forward.1} parent=0 // pred_fallthru
    _
  // Predicated region
  $region18: #{vector_quantizer_forward.1} parent=0 // pred_check
    _
  $region19: #{vector_quantizer_forward.1} parent=0 // pred_check_branch
    %863 = sbr.rel (0) target = $region21
  $region20: #{vector_quantizer_forward.1} parent=0 // pred_region
    _
  $region21: #{vector_quantizer_forward.1} parent=0 // pred_fallthru
    _
  // Predicated region
  $region22: #{vector_quantizer_forward.1} parent=0 // pred_check
    _
  $region23: #{vector_quantizer_forward.1} parent=0 // pred_check_branch
    %865 = sbr.rel (0) target = $region25
  $region24: #{vector_quantizer_forward.1} parent=0 // pred_region
    _
  $region25: #{vector_quantizer_forward.1} parent=0 // pred_fallthru
    _
  // Predicated region
  $region26: #{vector_quantizer_forward.1} parent=0 // pred_check
    _
  $region27: #{vector_quantizer_forward.1} parent=0 // pred_check_branch
    %867 = sbr.rel (0) target = $region29
  $region28: #{vector_quantizer_forward.1} parent=0 // pred_region
    _
  $region29: #{vector_quantizer_forward.1} parent=0 // pred_fallthru
    _
  // Predicated region
  $region30: #{vector_quantizer_forward.1} parent=0 // pred_check
    _
  $region31: #{vector_quantizer_forward.1} parent=0 // pred_check_branch
    %869 = sbr.rel (0) target = $region33
  $region32: #{vector_quantizer_forward.1} parent=0 // pred_region
    _
  $region33: #{vector_quantizer_forward.1} parent=0 // pred_fallthru
    _
  // Predicated region
  $region34: #{vector_quantizer_forward.1} parent=0 // pred_check
    _
  $region35: #{vector_quantizer_forward.1} parent=0 // pred_check_branch
    %871 = sbr.rel (0) target = $region37
  $region36: #{vector_quantizer_forward.1} parent=0 // pred_region
    _
  $region37: #{vector_quantizer_forward.1} parent=0 // pred_fallthru
    _
  // Predicated region
  $region38: #{vector_quantizer_forward.1} parent=0 // pred_check
    _
  $region39: #{vector_quantizer_forward.1} parent=0 // pred_check_branch
    %873 = sbr.rel (0) target = $region41
  $region40: #{vector_quantizer_forward.1} parent=0 // pred_region
    _
  $region41: #{vector_quantizer_forward.1} parent=0 // pred_fallthru
    _
  // Predicated region
  $region42: #{vector_quantizer_forward.1} parent=0 // pred_check
    _
  $region43: #{vector_quantizer_forward.1} parent=0 // pred_check_branch
    %875 = sbr.rel (0) target = $region45
  $region44: #{vector_quantizer_forward.1} parent=0 // pred_region
    _
  $region45: #{vector_quantizer_forward.1} parent=0 // pred_fallthru
    _
  // Predicated region
  $region46: #{vector_quantizer_forward.1} parent=0 // pred_check
    _
  $region47: #{vector_quantizer_forward.1} parent=0 // pred_check_branch
    %877 = sbr.rel (0) target = $region49
  $region48: #{vector_quantizer_forward.1} parent=0 // pred_region
    _
  $region49: #{vector_quantizer_forward.1} parent=0 // pred_fallthru
    _

</llo_original>
